<compile_context>
chip_gen: v6e
topology: v6e:2x2x1
jax: 0.10.0
libtpu: 0.0.40
codegen_flags: <defaults>
</compile_context>

<pallas_src>
import jax
import jax.numpy as jnp
from jax.experimental import pallas as pl
from jax.experimental.pallas import tpu as pltpu

_MIB = 1024 * 1024


# ---------------------------------------------------------------------------
# Kernels
# ---------------------------------------------------------------------------

def _finalize_m(acc, w, gamma):
    """M = gamma * (acc @ W) with f32 accumulator and f32 W (tiny C^3 work)."""
    bb, C = acc.shape[0], acc.shape[1]
    if bb == 1 or C % 8 == 0:
        m = jnp.dot(acc.reshape(bb * C, C), w, preferred_element_type=jnp.float32)
        return (gamma * m).reshape(bb, C, C)
    # Rare layout-unfriendly case (bb>1 and C not a multiple of 8): tiny per-batch dots.
    ms = [jnp.dot(acc[b], w, preferred_element_type=jnp.float32) for b in range(bb)]
    return gamma * jnp.stack(ms, axis=0)


def _make_fused_kernel(tn, nt):
    """Single-pass kernel: x slab resident in VMEM, read from HBM once."""

    def kernel(gamma_ref, w_ref, x_ref, o_ref, acc_ref):
        # Pass A: accumulate Gram matrix xxT over lane-dense tiles of the slab.
        acc_ref[...] = jnp.zeros_like(acc_ref)
        for t in range(nt):
            xb = x_ref[:, :, t * tn:(t + 1) * tn].astype(jnp.bfloat16)
            acc_ref[...] += jnp.einsum("bin,bjn->bij", xb, xb,
                                       preferred_element_type=jnp.float32)

        # Finalize: M = gamma * (xxT @ W), all f32 (negligible C^3 work).
        m = _finalize_m(acc_ref[...], w_ref[...].astype(jnp.float32), gamma_ref[0])
        m_bf = m.astype(jnp.bfloat16)

        # Pass B: o = M @ x_tile + x_tile, streamed from the same resident slab.
        for t in range(nt):
            xf = x_ref[:, :, t * tn:(t + 1) * tn].astype(jnp.float32)
            o = jnp.einsum("bij,bjn->bin", m_bf, xf.astype(jnp.bfloat16),
                           preferred_element_type=jnp.float32)
            o_ref[:, :, t * tn:(t + 1) * tn] = (o + xf).astype(o_ref.dtype)

    return kernel


def _gram_kernel(gamma_ref, w_ref, x_ref, m_ref, acc_ref):
    """Fallback pass 1: accumulate xxT over N tiles; finalize M = gamma*(xxT @ W)."""
    t = pl.program_id(1)

    @pl.when(t == 0)
    def _init():
        acc_ref[...] = jnp.zeros_like(acc_ref)

    xb = x_ref[...].astype(jnp.bfloat16)           # cast in-kernel (no host pre-cast)
    acc_ref[...] += jnp.einsum("bin,bjn->bij", xb, xb,
                               preferred_element_type=jnp.float32)

    @pl.when(t == pl.num_programs(1) - 1)
    def _finalize():
        m = _finalize_m(acc_ref[...], w_ref[...].astype(jnp.float32), gamma_ref[0])
        m_ref[...] = m.astype(m_ref.dtype)         # M stays f32 (tiny)


def _apply_kernel(m_ref, x_ref, o_ref):
    """Fallback pass 2: o = M @ x_tile + x_tile over lane-dense N tiles."""
    xf = x_ref[...].astype(jnp.float32)
    o = jnp.einsum("bij,bjn->bin",
                   m_ref[...].astype(jnp.bfloat16),
                   xf.astype(jnp.bfloat16),
                   preferred_element_type=jnp.float32)
    o_ref[...] = (o + xf).astype(o_ref.dtype)


# ---------------------------------------------------------------------------
# Planning / VMEM budgeting
# ---------------------------------------------------------------------------

def _vmem_capacity_bytes():
    default = 64 * _MIB  # conservative (v7x per-TC)
    try:
        info = pltpu.get_tpu_info()
        cap = int(getattr(info, "vmem_capacity_bytes", 0) or 0)
        if cap > 0:
            return min(max(cap, 48 * _MIB), 192 * _MIB)
    except Exception:
        pass
    return default


def _choose_bb(B, C, n_pad, x_bytes, slab_cap):
    """Batches per grid step; keep >=2 batch blocks so both TCs get work."""
    bb_max = 8 if B < 2 else min(8, max(1, B // 2))
    bb = 1
    while (bb * 2 <= bb_max and B % (bb * 2) == 0
           and (bb * 2) * C * n_pad * x_bytes <= slab_cap):
        bb *= 2
    return bb


def _largest_lane_tile(n_pad, fits):
    """Largest multiple-of-128 divisor of n_pad satisfying fits(tn), else None."""
    m = n_pad // 128
    for k in range(1, m + 1):
        if m % k == 0:
            tn = (m // k) * 128
            if fits(tn):
                return tn
    return None


def _fused_bytes(bb, C, n_pad, tn, x_bytes, out_bytes):
    return (2 * bb * C * n_pad * x_bytes        # resident x slab (double-buffered)
            + 2 * bb * C * n_pad * out_bytes    # output slab (double-buffered)
            + bb * C * C * 4                    # f32 Gram accumulator scratch
            + 2 * C * C * 4                     # W block
            + bb * C * C * (4 + 2)              # M (f32 value + bf16 copy)
            + bb * C * tn * (2 + 2 + 4))        # per-tile bf16 copies + f32 result


def _two_pass_bytes(bb, C, tn, x_bytes, out_bytes):
    p1 = (2 * bb * C * tn * x_bytes             # x tile
          + bb * C * C * 4                      # acc scratch
          + 2 * C * C * 4                       # W
          + 2 * bb * C * C * 4                  # M output block
          + bb * C * tn * 2)                    # bf16 copy
    p2 = (2 * bb * C * tn * x_bytes             # x tile
          + 2 * bb * C * tn * out_bytes         # out tile
          + 2 * bb * C * C * 4                  # M block
          + bb * C * tn * (2 + 2 + 4)           # bf16 copies + f32 result
          + bb * C * C * 2)                     # bf16 M copy
    return max(p1, p2)


# ---------------------------------------------------------------------------
# Wrapper
# ---------------------------------------------------------------------------

def simple_self_attention(x_nchw, conv_weight, gamma):
    """x_nchw: (B, C, H, W); conv_weight: (C, C, 1); gamma: (1,)."""
    B, C, H, W = x_nchw.shape
    N = H * W
    dtype = x_nchw.dtype
    x_bytes = jnp.dtype(dtype).itemsize
    out_bytes = x_bytes

    x_flat = x_nchw.reshape(B, C, N)                 # metadata-only reshape, no cast
    w2d = conv_weight[:, :, 0]                       # ks == 1 Conv1d == matmul
    # TODO(synk): ks > 1 (true padded 1-D conv along N) not implemented; the module
    # default ks=1 reduces to a per-batch matmul, which is what we compute here.
    gamma = jnp.asarray(gamma, jnp.float32).reshape((1,))

    # Lane-dense N: pad to a multiple of 128 (zeros don't perturb the Gram matrix;
    # padded output columns are discarded below).
    n_pad = ((N + 127) // 128) * 128
    if n_pad != N:
        x_flat = jnp.pad(x_flat, ((0, 0), (0, 0), (0, n_pad - N)))

    cap = _vmem_capacity_bytes()
    vmem_limit = max(32 * _MIB, min(cap - 24 * _MIB, (3 * cap) // 4))
    budget = vmem_limit - 4 * _MIB                   # headroom for compiler scratch
    slab_cap = 4 * _MIB if cap >= 100 * _MIB else 2 * _MIB

    bb = _choose_bb(B, C, n_pad, x_bytes, slab_cap)
    nb = B // bb

    def cparams(sem):
        return pltpu.CompilerParams(dimension_semantics=sem,
                                    vmem_limit_bytes=int(vmem_limit))

    tn_fused = _largest_lane_tile(
        n_pad, lambda tn: _fused_bytes(bb, C, n_pad, tn, x_bytes, out_bytes) <= budget)

    if tn_fused is not None:
        # ---- Fused single pass: x read from HBM exactly once per batch block ----
        nt = n_pad // tn_fused
        out_pad = pl.pallas_call(
            _make_fused_kernel(tn_fused, nt),
            out_shape=jax.ShapeDtypeStruct((B, C, n_pad), dtype),
            grid=(nb,),
            in_specs=[
                pl.BlockSpec(memory_space=pltpu.SMEM),                # gamma
                pl.BlockSpec((C, C), lambda b: (0, 0)),               # W (shared)
                pl.BlockSpec((bb, C, n_pad), lambda b: (b, 0, 0)),    # x slab
            ],
            out_specs=pl.BlockSpec((bb, C, n_pad), lambda b: (b, 0, 0)),
            scratch_shapes=[pltpu.VMEM((bb, C, C), jnp.float32)],
            compiler_params=cparams(("parallel",)),
        )(gamma, w2d, x_flat)
    else:
        # ---- Fallback two-pass path (large per-batch slabs) ----
        tn = _largest_lane_tile(
            n_pad, lambda t: _two_pass_bytes(bb, C, t, x_bytes, out_bytes) <= budget)
        if tn is None:
            tn = 128  # huge C: smallest lane-dense tile
        nt = n_pad // tn

        m = pl.pallas_call(
            _gram_kernel,
            out_shape=jax.ShapeDtypeStruct((B, C, C), jnp.float32),
            grid=(nb, nt),
            in_specs=[
                pl.BlockSpec(memory_space=pltpu.SMEM),                # gamma
                pl.BlockSpec((C, C), lambda b, t: (0, 0)),            # W (shared)
                pl.BlockSpec((bb, C, tn), lambda b, t: (b, 0, t)),    # x tiles
            ],
            out_specs=pl.BlockSpec((bb, C, C), lambda b, t: (b, 0, 0)),
            scratch_shapes=[pltpu.VMEM((bb, C, C), jnp.float32)],
            compiler_params=cparams(("parallel", "arbitrary")),
        )(gamma, w2d, x_flat)

        out_pad = pl.pallas_call(
            _apply_kernel,
            out_shape=jax.ShapeDtypeStruct((B, C, n_pad), dtype),
            grid=(nb, nt),
            in_specs=[
                pl.BlockSpec((bb, C, C), lambda b, t: (b, 0, 0)),     # M
                pl.BlockSpec((bb, C, tn), lambda b, t: (b, 0, t)),    # x tiles
            ],
            out_specs=pl.BlockSpec((bb, C, tn), lambda b, t: (b, 0, t)),
            compiler_params=cparams(("parallel", "parallel")),
        )(m, x_flat)

    out = out_pad[:, :, :N] if n_pad != N else out_pad
    return out.reshape(B, C, H, W)


# ---------------------------------------------------------------------------
# Pure-JAX reference
# ---------------------------------------------------------------------------

def _reference(x_nchw, conv_weight, gamma):
    B, C, H, W = x_nchw.shape
    x = x_nchw.reshape(B, C, H * W).astype(jnp.float32)
    w2d = conv_weight[:, :, 0].astype(jnp.float32)
    convx = jnp.einsum("oi,bin->bon", w2d, x)
    xxT = jnp.einsum("bin,bjn->bij", x, x)
    o = jnp.einsum("bij,bjn->bin", xxT, convx)
    o = gamma[0] * o + x
    return o.reshape(B, C, H, W).astype(x_nchw.dtype)


if __name__ == "__main__":
    B, C, H, W = 2, 4, 16, 16  # n_in = C = 4, spatial 16x16
    key = jax.random.PRNGKey(0)
    kx, kw = jax.random.split(key)

    x = jax.random.normal(kx, (B, C, H, W), dtype=jnp.float32)
    # Conv1d(n_in, n_in, ks=1, bias=False) weight: (n_in, n_in, 1)
    conv_weight = jax.random.normal(kw, (C, C, 1), dtype=jnp.float32) * 0.1
    # Module initializes gamma = 0.0; use a nonzero value so the attention path
    # is actually exercised.
    gamma = jnp.array([0.5], dtype=jnp.float32)

    out = jax.block_until_ready(simple_self_attention(x, conv_weight, gamma))
    ref = _reference(x, conv_weight, gamma)

    assert out.shape == (B, C, H, W)
    assert out.dtype == x.dtype
    # Gram accumulation / finalize are f32 now; only the final M@x contraction uses
    # bf16 MXU operands, so the tolerance is tightened vs. the previous version.
    assert jnp.allclose(out, ref, rtol=2e-2, atol=5e-1), (
        f"mismatch vs reference, max abs err = {jnp.max(jnp.abs(out - ref))}")

    print("KERNEL_OK")
</pallas_src>

<mosaic_0001>
module attributes {stable_mosaic.version = 11 : i64} {
  func.func @kernel(%arg0: i32, %arg1: memref<1xf32, #tpu.memory_space<smem>>, %arg2: memref<4x4xf32, #tpu.memory_space<vmem>>, %arg3: memref<1x4x256xf32, #tpu.memory_space<vmem>>, %arg4: memref<1x4x256xf32, #tpu.memory_space<vmem>>, %arg5: memref<1x4x4xf32, #tpu.memory_space<vmem>>) attributes {dimension_semantics = [#tpu.dimension_semantics<parallel>], iteration_bounds = array<i64: 2>, scalar_prefetch = 0 : i64, scratch_operands = 1 : i64, tpu.core_type = #tpu.core_type<tc>, window_params = [{transform_indices = @transform_0, window_bounds = array<i64: 1>}, {pipeline_mode = #tpu.pipeline_mode<synchronous>, transform_indices = @transform_1, window_bounds = array<i64: 4, 4>}, {transform_indices = @transform_2, window_bounds = array<i64: 1, 4, 256>}, {transform_indices = @transform_3, window_bounds = array<i64: 1, 4, 256>}]} {
    %cst = arith.constant 0.000000e+00 : f32
    %0 = vector.broadcast %cst : f32 to vector<1x4x4xf32>
    %c0 = arith.constant 0 : index
    %c0_0 = arith.constant 0 : index
    %c0_1 = arith.constant 0 : index
    %1 = vector.load %arg5[%c0, %c0_0, %c0_1] : memref<1x4x4xf32, #tpu.memory_space<vmem>>, vector<1x4x4xf32>
    tpu.vector_store %arg5[%c0, %c0_0, %c0_1], %0 {strides = array<i32>} : memref<1x4x4xf32, #tpu.memory_space<vmem>>, vector<1x4x4xf32>,
    %c0_2 = arith.constant 0 : index
    %c0_3 = arith.constant 0 : index
    %c0_4 = arith.constant 0 : index
    %2 = vector.load %arg3[%c0_2, %c0_3, %c0_4] : memref<1x4x256xf32, #tpu.memory_space<vmem>>, vector<1x4x256xf32>
    %3 = arith.truncf %2 : vector<1x4x256xf32> to vector<1x4x256xbf16>
    %c0_5 = arith.constant 0 : index
    %c0_6 = arith.constant 0 : index
    %c0_7 = arith.constant 0 : index
    %4 = vector.load %arg5[%c0_5, %c0_6, %c0_7] : memref<1x4x4xf32, #tpu.memory_space<vmem>>, vector<1x4x4xf32>
    "tpu.trace_start"() <{level = 10 : i32, message = "bin,bjn->bij"}> : () -> ()
    %cst_8 = arith.constant dense<0.000000e+00> : vector<1x4x4xf32>
    %5 = tpu.matmul %3, %3, %cst_8 {dimension_numbers = #tpu.dot_dimension_numbers<[2], [2], [1], [1], [0, 0, 0, 1, 1, 1], [0], [0]>} : vector<1x4x256xbf16>, vector<1x4x256xbf16>, vector<1x4x4xf32> -> vector<1x4x4xf32>
    "tpu.trace_stop"() : () -> ()
    %6 = arith.addf %4, %5 : vector<1x4x4xf32>
    %c0_9 = arith.constant 0 : index
    %c0_10 = arith.constant 0 : index
    %c0_11 = arith.constant 0 : index
    %7 = vector.load %arg5[%c0_9, %c0_10, %c0_11] : memref<1x4x4xf32, #tpu.memory_space<vmem>>, vector<1x4x4xf32>
    tpu.vector_store %arg5[%c0_9, %c0_10, %c0_11], %6 {strides = array<i32>} : memref<1x4x4xf32, #tpu.memory_space<vmem>>, vector<1x4x4xf32>,
    %c0_12 = arith.constant 0 : index
    %c0_13 = arith.constant 0 : index
    %c0_14 = arith.constant 0 : index
    %8 = vector.load %arg5[%c0_12, %c0_13, %c0_14] : memref<1x4x4xf32, #tpu.memory_space<vmem>>, vector<1x4x4xf32>
    %c0_15 = arith.constant 0 : index
    %c0_16 = arith.constant 0 : index
    %9 = vector.load %arg2[%c0_15, %c0_16] : memref<4x4xf32, #tpu.memory_space<vmem>>, vector<4x4xf32>
    %c0_17 = arith.constant 0 : index
    %10 = memref.load %arg1[%c0_17] : memref<1xf32, #tpu.memory_space<smem>>
    %11 = vector.shape_cast %8 : vector<1x4x4xf32> to vector<4x4xf32>
    %cst_18 = arith.constant dense<0.000000e+00> : vector<4x4xf32>
    %12 = tpu.matmul %11, %9, %cst_18 {dimension_numbers = #tpu.dot_dimension_numbers<[1], [0], [0], [1], [0, 0, 1, 1], [], []>} : vector<4x4xf32>, vector<4x4xf32>, vector<4x4xf32> -> vector<4x4xf32>
    %13 = vector.broadcast %10 : f32 to vector<4x4xf32>
    %14 = arith.mulf %13, %12 : vector<4x4xf32>
    %15 = vector.shape_cast %14 : vector<4x4xf32> to vector<1x4x4xf32>
    %16 = arith.truncf %15 : vector<1x4x4xf32> to vector<1x4x4xbf16>
    %c0_19 = arith.constant 0 : index
    %c0_20 = arith.constant 0 : index
    %c0_21 = arith.constant 0 : index
    %17 = vector.load %arg3[%c0_19, %c0_20, %c0_21] : memref<1x4x256xf32, #tpu.memory_space<vmem>>, vector<1x4x256xf32>
    %18 = arith.truncf %17 : vector<1x4x256xf32> to vector<1x4x256xbf16>
    "tpu.trace_start"() <{level = 10 : i32, message = "bij,bjn->bin"}> : () -> ()
    %cst_22 = arith.constant dense<0.000000e+00> : vector<1x4x256xf32>
    %19 = tpu.matmul %16, %18, %cst_22 {dimension_numbers = #tpu.dot_dimension_numbers<[2], [1], [1], [2], [0, 0, 0, 1, 1, 2], [0], [0]>} : vector<1x4x4xbf16>, vector<1x4x256xbf16>, vector<1x4x256xf32> -> vector<1x4x256xf32>
    "tpu.trace_stop"() : () -> ()
    %20 = arith.addf %19, %17 : vector<1x4x256xf32>
    %c0_23 = arith.constant 0 : index
    %c0_24 = arith.constant 0 : index
    %c0_25 = arith.constant 0 : index
    %21 = vector.load %arg4[%c0_23, %c0_24, %c0_25] : memref<1x4x256xf32, #tpu.memory_space<vmem>>, vector<1x4x256xf32>
    tpu.vector_store %arg4[%c0_23, %c0_24, %c0_25], %20 {strides = array<i32>} : memref<1x4x256xf32, #tpu.memory_space<vmem>>, vector<1x4x256xf32>,
    return
  }
  func.func @transform_0(%arg0: i32) -> i32 {
    %c0_i32 = arith.constant 0 : i32
    %c0_i32_0 = arith.constant 0 : i32
    return %c0_i32 : i32
  }
  func.func @transform_1(%arg0: i32) -> (i32, i32) {
    %c0_i32 = arith.constant 0 : i32
    %c0_i32_0 = arith.constant 0 : i32
    %c0_i32_1 = arith.constant 0 : i32
    return %c0_i32, %c0_i32_0 : i32, i32
  }
  func.func @transform_2(%arg0: i32) -> (i32, i32, i32) {
    %c0_i32 = arith.constant 0 : i32
    %c0_i32_0 = arith.constant 0 : i32
    %c0_i32_1 = arith.constant 0 : i32
    return %arg0, %c0_i32, %c0_i32_0 : i32, i32, i32
  }
  func.func @transform_3(%arg0: i32) -> (i32, i32, i32) {
    %c0_i32 = arith.constant 0 : i32
    %c0_i32_0 = arith.constant 0 : i32
    %c0_i32_1 = arith.constant 0 : i32
    return %arg0, %c0_i32, %c0_i32_0 : i32, i32, i32
  }
}

</mosaic_0001>

<llo_original>
// kernel: tpu_custom_call.1
$region0: #{tpu_custom_call.1}
  #allocation0 [shape = 'u32[]', space=smem, size = 0x4, offset = 0x4, fixed_abs, tag = 'smem constant byte address 0x4 - core index']
  #allocation1 [shape = 'u32[144,128]{1,0:T(1,128)}', space=vmem, size = 0x12000, scoped, tag = 'internal scratch']
  #allocation2 [shape = 'f32[1,4,4]{2,1,0:T(4,128)}', space=vmem, size = 0x800, scoped, tag = 'scratch operand']
  #allocation3 [shape = 'f32[1]{0:T(128)S(6)}', space=smem, size = 0x200, scoped, tag = 'scoped memory for tpu_custom_call.1']
  %s0 = inlined_call_operand.<no memory space> [shape: f32[1], index: 0, kind: input, shape index: {}]
  %s1 = inlined_call_operand.hbm [shape: f32[4,4], index: 1, kind: input, shape index: {}]
  %s2 = inlined_call_operand.hbm [shape: f32[2,4,256], index: 2, kind: input, shape index: {}]
  %s3 = inlined_call_operand.hbm [shape: f32[2,4,256], index: 3, kind: output, shape index: {}]
  %s4 = sld [smem:[#allocation0]]
  $region53: #{tpu_custom_call.1} parent=0
    _
  %s6 = ssub.s32 1, %s4
  %s7 = scalar_select 0, %s6, %s4
  %8 = sst [smem:[#allocation3]] %s0
  $region1: #{tpu_custom_call.1} parent=0
    #allocation4 [shape = 'u8[2048]{0}', space=vmem, size = 0x800, scoped, tag = 'input window, operand 1, single buffered']
    #allocation5 [shape = 's32[2]{0}', space=sflag, size = 0x8, scoped, tag = 'scoped memory for tpu_custom_call.1']
    #allocation6 [shape = 's32[2]{0}', space=sflag, size = 0x8, scoped, tag = 'scoped memory for tpu_custom_call.1']
    #allocation7 [shape = 'u8[8192]{0}', space=vmem, size = 0x2000, scoped, tag = 'input window, operand 2']
    #allocation8 [shape = 's32[2]{0}', space=sflag, size = 0x8, scoped, tag = 'scoped memory for tpu_custom_call.1']
    #allocation9 [shape = 'u8[8192]{0}', space=vmem, size = 0x2000, scoped, tag = 'output window, operand 0']
    %9 = vsyncpa [#allocation5], 0
    %10 = vsyncpa [#allocation8], 0
    %s11 = scalar_lea.sflag [#allocation8], 1
    %12 = vsyncpa %s11, 0
    %13 = vsyncpa [#allocation6], 0
    %s14 = scalar_lea.sflag [#allocation6], 1
    %15 = vsyncpa %s14, 0
    loop: start=0, step=1, limit=4
    $region2: #{tpu_custom_call.1} parent=1 // loop_pre_header
      _
    $region3: #{tpu_custom_call.1} parent=1 // loop_header
      %s17 = sphi 0, %s21
      %p18 = scmp.ge.s32.totalorder %s17, 4
      %s25 = sphi 0, %s25
      %s27 = sphi 0, %s25
      %s28 = sphi 0, %s27
      %s42 = sphi 0, %s28
      %s46 = sphi 0, %s46
      %s48 = sphi 0, %s46
      %s49 = sphi 0, %s48
      %s63 = sphi 0, %s49
      %s69 = sphi 0, %s71
      %s72 = sphi 0, %s69
      %s73 = sphi 0, %s72
      %s89 = sphi 0, %s73
      %s95 = sphi 0, %s97
      %s98 = sphi 0, %s95
      %s99 = sphi 0, %s98
      %s115 = sphi 0, %s99
    $region4: #{tpu_custom_call.1} parent=1 // loop_header_branch
      %20 = sbr.rel (%p18) target = $region8
    $region5: #{tpu_custom_call.1} parent=1 // loop_body
      %s22 = ssub.s32 %s17, 1
      %s23 = ssub.s32 %s17, 2
      %s24 = sadd.s32 %s17, 1
      %s26 = sadd.s32 %s25, 1
      %p29 = scmp.eq.s32.totalorder %s17, 1
      %p30 = scmp.ne.s32.totalorder %s25, %s27
      %p31 = scmp.eq.s32.totalorder %s17, 0
      %p32 = por %p30, %p31
      %p33 = scmp.ne.s32.totalorder %s25, %s27
      %p34 = scmp.eq.s32.totalorder %s22, 1
      %p35 = por %p33, %p34
      %p36 = scmp.ne.s32.totalorder %s27, %s28
      %p37 = scmp.eq.s32.totalorder %s22, 0
      %p38 = por %p36, %p37
      %p39 = scmp.ne.s32.totalorder %s27, %s28
      %p40 = scmp.eq.s32.totalorder %s23, 1
      %p41 = por %p39, %p40
      %p43 = scmp.ne.s32.totalorder %s28, %s42
      %p44 = scmp.eq.s32.totalorder %s23, 0
      %p45 = por %p43, %p44
      %s47 = sadd.s32 %s46, 1
      %p50 = scmp.eq.s32.totalorder %s17, 1
      %p51 = scmp.ne.s32.totalorder %s46, %s48
      %p52 = scmp.eq.s32.totalorder %s17, 0
      %p53 = por %p51, %p52
      %p54 = scmp.ne.s32.totalorder %s46, %s48
      %p55 = scmp.eq.s32.totalorder %s22, 1
      %p56 = por %p54, %p55
      %p57 = scmp.ne.s32.totalorder %s48, %s49
      %p58 = scmp.eq.s32.totalorder %s22, 0
      %p59 = por %p57, %p58
      %p60 = scmp.ne.s32.totalorder %s48, %s49
      %p61 = scmp.eq.s32.totalorder %s23, 1
      %p62 = por %p60, %p61
      %p64 = scmp.ne.s32.totalorder %s49, %s63
      %p65 = scmp.eq.s32.totalorder %s23, 0
      %p66 = por %p64, %p65
      %s67 = ssub.s32 %s17, %s24
      %p68 = scmp.eq.s32.totalorder %s67, 0
      %s70 = sadd.s32 %s69, 1
      %s71 = scalar_select %p68, %s69, %s70
      %p74 = pneg %p68
      %p75 = scmp.eq.s32.totalorder %s17, 1
      %p76 = por %p74, %p75
      %p77 = scmp.ne.s32.totalorder %s69, %s72
      %p78 = scmp.eq.s32.totalorder %s17, 0
      %p79 = por %p77, %p78
      %p80 = scmp.ne.s32.totalorder %s69, %s72
      %p81 = scmp.eq.s32.totalorder %s22, 1
      %p82 = por %p80, %p81
      %p83 = scmp.ne.s32.totalorder %s72, %s73
      %p84 = scmp.eq.s32.totalorder %s22, 0
      %p85 = por %p83, %p84
      %p86 = scmp.ne.s32.totalorder %s72, %s73
      %p87 = scmp.eq.s32.totalorder %s23, 1
      %p88 = por %p86, %p87
      %p90 = scmp.ne.s32.totalorder %s73, %s89
      %p91 = scmp.eq.s32.totalorder %s23, 0
      %p92 = por %p90, %p91
      %s93 = ssub.s32 %s17, %s24
      %p94 = scmp.eq.s32.totalorder %s93, 0
      %s96 = sadd.s32 %s95, 1
      %s97 = scalar_select %p94, %s95, %s96
      %p100 = pneg %p94
      %p101 = scmp.eq.s32.totalorder %s17, 1
      %p102 = por %p100, %p101
      %p103 = scmp.ne.s32.totalorder %s95, %s98
      %p104 = scmp.eq.s32.totalorder %s17, 0
      %p105 = por %p103, %p104
      %p106 = scmp.ne.s32.totalorder %s95, %s98
      %p107 = scmp.eq.s32.totalorder %s22, 1
      %p108 = por %p106, %p107
      %p109 = scmp.ne.s32.totalorder %s98, %s99
      %p110 = scmp.eq.s32.totalorder %s22, 0
      %p111 = por %p109, %p110
      %p112 = scmp.ne.s32.totalorder %s98, %s99
      %p113 = scmp.eq.s32.totalorder %s23, 1
      %p114 = por %p112, %p113
      %p116 = scmp.ne.s32.totalorder %s99, %s115
      %p117 = scmp.eq.s32.totalorder %s23, 0
      %p118 = por %p116, %p117
      %p119 = scmp.le.s32.totalorder 1, %s17
      %p120 = scmp.lt.s32.totalorder %s17, 3
      %p121 = pnand %p119, %p120
      %p122 = pneg %p121
      // Predicated region
      $region9: #{tpu_custom_call.1} parent=5 // pred_check
        _
      $region10: #{tpu_custom_call.1} parent=5 // pred_check_branch
        %124 = sbr.rel (%p121) target = $region12
      $region11: #{tpu_custom_call.1} parent=5 // pred_region
        %s125 = ssub.s32 %s17, 1
        // Predicated region
        $region13: #{tpu_custom_call.1} parent=11 // pred_check
          %p126 = pneg %p38
        $region14: #{tpu_custom_call.1} parent=11 // pred_check_branch
          %128 = sbr.rel (%p126) target = $region16
        $region15: #{tpu_custom_call.1} parent=11 // pred_region
          _
        $region16: #{tpu_custom_call.1} parent=11 // pred_fallthru
          _
        // Predicated region
        $region17: #{tpu_custom_call.1} parent=11 // pred_check
          %p129 = pneg %p59
        $region18: #{tpu_custom_call.1} parent=11 // pred_check_branch
          %131 = sbr.rel (%p129) target = $region20
        $region19: #{tpu_custom_call.1} parent=11 // pred_region
          %s133 = ssub.s32 64, 64
          %134 = vsyncadd [#allocation5], %s133
          %s136 = sshll.u32 [#allocation4], 4
          %s137 = int_to_ptr.vmem [resolvable:$true] %s136
          %139 = dma.hbm_to_vmem [thread:$0]  %s1, 64, %s137, [#allocation5]
        $region20: #{tpu_custom_call.1} parent=11 // pred_fallthru
          _
      $region12: #{tpu_custom_call.1} parent=5 // pred_fallthru
        _
      %p140 = scmp.lt.s32.totalorder %s17, 2
      // Predicated region
      $region21: #{tpu_custom_call.1} parent=5 // pred_check
        %p141 = pneg %p140
      $region22: #{tpu_custom_call.1} parent=5 // pred_check_branch
        %143 = sbr.rel (%p141) target = $region24
      $region23: #{tpu_custom_call.1} parent=5 // pred_region
        // Predicated region
        $region25: #{tpu_custom_call.1} parent=23 // pred_check
          %p144 = pneg %p79
        $region26: #{tpu_custom_call.1} parent=23 // pred_check_branch
          %146 = sbr.rel (%p144) target = $region28
        $region27: #{tpu_custom_call.1} parent=23 // pred_region
          %s147 = sand.u32 %s69, 1
          %s148 = scalar_lea.sflag [#allocation8], %s147
          %s149 = sand.u32 %s69, 1
          %s150 = smul.addr %s149, 8
          %s151 = scalar_lea.vmem [#allocation7], %s150
          %s153 = ssub.s32 128, 128
          %154 = vsyncadd %s148, %s153
          %s155 = smul.addr %s17, 2
          %s156 = smul.addr %s155, 64
          %s157 = scalar_lea.hbm %s2, %s156
          %s159 = sshll.u32 %s151, 4
          %s160 = int_to_ptr.vmem [resolvable:$true] %s159
          %162 = dma.hbm_to_vmem [thread:$0]  %s157, 128, %s160, %s148
        $region28: #{tpu_custom_call.1} parent=23 // pred_fallthru
          _
      $region24: #{tpu_custom_call.1} parent=5 // pred_fallthru
        _
      %p163 = scmp.le.s32.totalorder 1, %s17
      %p164 = scmp.lt.s32.totalorder %s17, 3
      %p165 = pnand %p163, %p164
      %p166 = pneg %p165
      // Predicated region
      $region29: #{tpu_custom_call.1} parent=5 // pred_check
        _
      $region30: #{tpu_custom_call.1} parent=5 // pred_check_branch
        %168 = sbr.rel (%p165) target = $region32
      $region31: #{tpu_custom_call.1} parent=5 // pred_region
        %s169 = ssub.s32 %s17, 1
        // Predicated region
        $region33: #{tpu_custom_call.1} parent=31 // pred_check
          %p170 = pneg %p59
        $region34: #{tpu_custom_call.1} parent=31 // pred_check_branch
          %172 = sbr.rel (%p170) target = $region36
        $region35: #{tpu_custom_call.1} parent=31 // pred_region
          %173 = dma.done [#allocation5], 64
        $region36: #{tpu_custom_call.1} parent=31 // pred_fallthru
          _
        %s174 = sand.u32 %s72, 1
        %s175 = scalar_lea.sflag [#allocation8], %s174
        %s176 = sand.u32 %s72, 1
        %s177 = smul.addr %s176, 8
        %s178 = scalar_lea.vmem [#allocation7], %s177
        // Predicated region
        $region37: #{tpu_custom_call.1} parent=31 // pred_check
          %p179 = pneg %p85
        $region38: #{tpu_custom_call.1} parent=31 // pred_check_branch
          %181 = sbr.rel (%p179) target = $region40
        $region39: #{tpu_custom_call.1} parent=31 // pred_region
          %182 = dma.done %s175, 128
        $region40: #{tpu_custom_call.1} parent=31 // pred_fallthru
          _
        %p183 = pneg %p38
        %p184 = pneg %p35
        %p185 = pneg %p59
        %p186 = pneg %p56
        %s187 = sand.u32 %s72, 1
        %s188 = scalar_lea.sflag [#allocation8], %s187
        %s189 = sand.u32 %s72, 1
        %s190 = smul.addr %s189, 8
        %s191 = scalar_lea.vmem [#allocation7], %s190
        %p192 = pneg %p85
        %p193 = pneg %p82
        %p194 = pneg %p111
        %p195 = pneg %p108
        %s196 = sand.u32 %s98, 1
        %s197 = scalar_lea.sflag [#allocation6], %s196
        %s198 = sand.u32 %s98, 1
        %s199 = smul.addr %s198, 8
        %s200 = scalar_lea.vmem [#allocation9], %s199
        %vm202 = vcmask 27648
        %203 = vst.msk [vmem:[#allocation2] sm:$0xf] %vm202, 0.0
        %v204 = vld [vmem:[%s178] sm:$0xff]
        %v206 = vcombine.high %v204, %v204
        %v208 = vpack.c.bf16 %v204, %v204
        %v209 = vpack.c.bf16 %v206, %v206
        %v210 = vld [vmem:[#allocation2] sm:$0xf]
        %211 = vmatprep.subr.bf16.mxu0 0
        %212 = vmatpush1.bf16.xpose.msra.mxu0 0
        %213 = vmatprep.subr.bf16.mxu0 0
        %214 = vmatpush1.bf16.xpose.msra.mxu0 0
        %215 = vmatprep.subr.bf16.mxu0 0
        %216 = vmatpush1.bf16.xpose.msra.mxu0 0
        %217 = vmatprep.subr.bf16.mxu0 0
        %218 = vmatpush1.bf16.xpose.msra.mxu0 0
        %219 = vmatprep.subr.bf16.mxu0 0
        %220 = vmatpush1.bf16.xpose.msra.mxu0 0
        %221 = vmatprep.subr.bf16.mxu0 0
        %222 = vmatpush1.bf16.xpose.msra.mxu0 0
        %223 = vmatprep.subr.bf16.mxu0 0
        %224 = vmatpush1.bf16.xpose.msra.mxu0 0
        %225 = vmatprep.subr.bf16.mxu0 %v209
        %226 = vmatpush1.bf16.xpose.msra.mxu0 %v208
        %227 = vmatprep.subr.bf16.mxu0 0
        %228 = vmatpush2.bf16.xpose.msra.mxu0 0
        %229 = vmatprep.subr.bf16.mxu0 0
        %230 = vmatpush2.bf16.xpose.msra.mxu0 0
        %231 = vmatprep.subr.bf16.mxu0 0
        %232 = vmatpush2.bf16.xpose.msra.mxu0 0
        %233 = vmatprep.subr.bf16.mxu0 0
        %234 = vmatpush2.bf16.xpose.msra.mxu0 0
        %235 = vmatprep.subr.bf16.mxu0 0
        %236 = vmatpush2.bf16.xpose.msra.mxu0 0
        %237 = vmatprep.subr.bf16.mxu0 0
        %238 = vmatpush2.bf16.xpose.msra.mxu0 0
        %239 = vmatprep.subr.bf16.mxu0 0
        %240 = vmatpush2.bf16.xpose.msra.mxu0 0
        %241 = vmatprep.subr.bf16.mxu0 0
        %242 = vmatpush2.bf16.xpose.msra.mxu0 0
        %243 = vmatprep.mubr.bf16.mxu0 %v209
        %244 = vmatmul.mubr.bf16.gmra.mxu0 %v208
        %v245 = vpop.f32.mrf.mxu0
        %v246 = vadd.f32 0.0, %v245
        %v247 = vpop.f32.mrf.mxu0
        %v248 = vpop.f32.mrf.mxu0
        %v249 = vpop.f32.mrf.mxu0
        %250 = vdwg.mxu0
        %v251 = vadd.f32 %v210, %v246
        %252 = vst.msk [vmem:[#allocation2] sm:$0xf] %vm202, %v251
        %v253 = vld [vmem:[#allocation2] sm:$0xf]
        %v254 = vld [vmem:[#allocation4] sm:$0xf]
        %s255 = sld [smem:[#allocation3]]
        %vm256 = vcmask 31744
        %v258 = vsel %vm256, %v253, 0
        %vm260 = vcmask 1043456
        %v262 = vsel %vm260, %v254, 0
        %264 = vmatprep.subr.mxu0 0.0
        %265 = vmatpush1.msra.mxu0 0.0
        %266 = vmatprep.subr.mxu0 0.0
        %267 = vmatpush1.msra.mxu0 0.0
        %268 = vmatprep.subr.mxu0 0.0
        %269 = vmatpush1.msra.mxu0 0.0
        %270 = vmatprep.subr.mxu0 0.0
        %271 = vmatpush1.msra.mxu0 0.0
        %272 = vmatprep.subr.mxu0 0.0
        %273 = vmatpush1.msra.mxu0 0.0
        %274 = vmatprep.subr.mxu0 0.0
        %275 = vmatpush1.msra.mxu0 0.0
        %276 = vmatprep.subr.mxu0 0.0
        %277 = vmatpush1.msra.mxu0 0.0
        %278 = vmatprep.subr.mxu0 0.0
        %279 = vmatpush1.msra.mxu0 0.0
        %280 = vmatprep.subr.mxu0 0.0
        %281 = vmatpush1.msra.mxu0 0.0
        %282 = vmatprep.subr.mxu0 0.0
        %283 = vmatpush1.msra.mxu0 0.0
        %284 = vmatprep.subr.mxu0 0.0
        %285 = vmatpush1.msra.mxu0 0.0
        %286 = vmatprep.subr.mxu0 0.0
        %287 = vmatpush1.msra.mxu0 0.0
        %288 = vmatprep.subr.mxu0 0.0
        %289 = vmatpush1.msra.mxu0 0.0
        %290 = vmatprep.subr.mxu0 0.0
        %291 = vmatpush1.msra.mxu0 0.0
        %292 = vmatprep.subr.mxu0 0.0
        %293 = vmatpush1.msra.mxu0 0.0
        %294 = vmatprep.subr.mxu0 0.0
        %295 = vmatpush1.msra.mxu0 %v262
        %296 = vmatprep.subr.mxu0 0.0
        %297 = vmatpush2.msra.mxu0 0.0
        %298 = vmatprep.subr.mxu0 0.0
        %299 = vmatpush2.msra.mxu0 0.0
        %300 = vmatprep.subr.mxu0 0.0
        %301 = vmatpush2.msra.mxu0 0.0
        %302 = vmatprep.subr.mxu0 0.0
        %303 = vmatpush2.msra.mxu0 0.0
        %304 = vmatprep.subr.mxu0 0.0
        %305 = vmatpush2.msra.mxu0 0.0
        %306 = vmatprep.subr.mxu0 0.0
        %307 = vmatpush2.msra.mxu0 0.0
        %308 = vmatprep.subr.mxu0 0.0
        %309 = vmatpush2.msra.mxu0 0.0
        %310 = vmatprep.subr.mxu0 0.0
        %311 = vmatpush2.msra.mxu0 0.0
        %312 = vmatprep.subr.mxu0 0.0
        %313 = vmatpush2.msra.mxu0 0.0
        %314 = vmatprep.subr.mxu0 0.0
        %315 = vmatpush2.msra.mxu0 0.0
        %316 = vmatprep.subr.mxu0 0.0
        %317 = vmatpush2.msra.mxu0 0.0
        %318 = vmatprep.subr.mxu0 0.0
        %319 = vmatpush2.msra.mxu0 0.0
        %320 = vmatprep.subr.mxu0 0.0
        %321 = vmatpush2.msra.mxu0 0.0
        %322 = vmatprep.subr.mxu0 0.0
        %323 = vmatpush2.msra.mxu0 0.0
        %324 = vmatprep.subr.mxu0 0.0
        %325 = vmatpush2.msra.mxu0 0.0
        %326 = vmatprep.subr.mxu0 0.0
        %327 = vmatpush2.msra.mxu0 0.0
        %328 = vmatprep.mubr.f32.mxu0 0.0
        %329 = vmatmul.mubr.f32.gmra.mxu0 %v258
        %v330 = vpop.f32.mrf.mxu0
        %v331 = vadd.f32 0.0, %v330
        %v332 = vpop.f32.mrf.mxu0
        %333 = vdwg.mxu0
        %v334 = vstv %s255
        %v335 = vmul.f32 %v334, %v331
        %v336 = vpack.c.bf16 %v335, %v335
        %v337 = vld [vmem:[%s178] sm:$0xff]
        %v339 = vcombine.high %v337, %v337
        %v341 = vpack.c.bf16 %v337, %v337
        %v342 = vpack.c.bf16 %v339, %v339
        %v344 = vsel %vm256, %v336, 0
        %vm346 = vcmask 1041408
        %v348 = vsel %vm346, %v341, 0
        %v351 = vsel %vm346, %v342, 0
        %353 = vmatprep.subr.bf16.mxu0 0
        %354 = vmatpush1.bf16.msra.mxu0 0
        %355 = vmatprep.subr.bf16.mxu0 0
        %356 = vmatpush1.bf16.msra.mxu0 0
        %357 = vmatprep.subr.bf16.mxu0 0
        %358 = vmatpush1.bf16.msra.mxu0 0
        %359 = vmatprep.subr.bf16.mxu0 0
        %360 = vmatpush1.bf16.msra.mxu0 0
        %361 = vmatprep.subr.bf16.mxu0 0
        %362 = vmatpush1.bf16.msra.mxu0 0
        %363 = vmatprep.subr.bf16.mxu0 0
        %364 = vmatpush1.bf16.msra.mxu0 0
        %365 = vmatprep.subr.bf16.mxu0 0
        %366 = vmatpush1.bf16.msra.mxu0 0
        %367 = vmatprep.subr.bf16.mxu0 %v351
        %368 = vmatpush1.bf16.msra.mxu0 %v348
        %369 = vmatprep.subr.bf16.mxu0 0
        %370 = vmatpush2.bf16.msra.mxu0 0
        %371 = vmatprep.subr.bf16.mxu0 0
        %372 = vmatpush2.bf16.msra.mxu0 0
        %373 = vmatprep.subr.bf16.mxu0 0
        %374 = vmatpush2.bf16.msra.mxu0 0
        %375 = vmatprep.subr.bf16.mxu0 0
        %376 = vmatpush2.bf16.msra.mxu0 0
        %377 = vmatprep.subr.bf16.mxu0 0
        %378 = vmatpush2.bf16.msra.mxu0 0
        %379 = vmatprep.subr.bf16.mxu0 0
        %380 = vmatpush2.bf16.msra.mxu0 0
        %381 = vmatprep.subr.bf16.mxu0 0
        %382 = vmatpush2.bf16.msra.mxu0 0
        %383 = vmatprep.subr.bf16.mxu0 0
        %384 = vmatpush2.bf16.msra.mxu0 0
        %385 = vmatprep.mubr.bf16.mxu0 0
        %386 = vmatmul.mubr.bf16.gmra.mxu0 %v344
        %v387 = vpop.f32.mrf.mxu0
        %v388 = vadd.f32 %v337, %v387
        %v389 = vpop.f32.mrf.mxu0
        %v390 = vadd.f32 %v339, %v389
        %v391 = vpop.f32.mrf.mxu0
        %v392 = vpop.f32.mrf.mxu0
        %393 = vdwg.mxu0
        %v396 = vcombine.low %v388, %v390
        %398 = vst [vmem:[%s200] sm:$0xff] %v396
        %s399 = sand.u32 %s98, 1
        %s400 = scalar_lea.sflag [#allocation6], %s399
        %s401 = sand.u32 %s98, 1
        %s402 = smul.addr %s401, 8
        %s403 = scalar_lea.vmem [#allocation9], %s402
        // Predicated region
        $region41: #{tpu_custom_call.1} parent=31 // pred_check
          %p404 = pneg %p108
        $region42: #{tpu_custom_call.1} parent=31 // pred_check_branch
          %406 = sbr.rel (%p404) target = $region44
        $region43: #{tpu_custom_call.1} parent=31 // pred_region
          %s408 = ssub.s32 128, 128
          %409 = vsyncadd %s400, %s408
          %s410 = smul.addr %s22, 2
          %s411 = smul.addr %s410, 64
          %s412 = scalar_lea.hbm %s3, %s411
          %s414 = sshll.u32 %s403, 4
          %s415 = int_to_ptr.vmem [resolvable:$true] %s414
          %417 = dma.vmem_to_hbm [thread:$0]  %s415, 128, %s412, %s400
        $region44: #{tpu_custom_call.1} parent=31 // pred_fallthru
          _
      $region32: #{tpu_custom_call.1} parent=5 // pred_fallthru
        _
      %p418 = scmp.le.s32.totalorder 2, %s17
      // Predicated region
      $region45: #{tpu_custom_call.1} parent=5 // pred_check
        %p419 = pneg %p418
      $region46: #{tpu_custom_call.1} parent=5 // pred_check_branch
        %421 = sbr.rel (%p419) target = $region48
      $region47: #{tpu_custom_call.1} parent=5 // pred_region
        %s422 = ssub.s32 %s17, 2
        // Predicated region
        $region49: #{tpu_custom_call.1} parent=47 // pred_check
          %p423 = pneg %p114
        $region50: #{tpu_custom_call.1} parent=47 // pred_check_branch
          %425 = sbr.rel (%p423) target = $region52
        $region51: #{tpu_custom_call.1} parent=47 // pred_region
          %s426 = sand.u32 %s99, 1
          %s427 = scalar_lea.sflag [#allocation6], %s426
          %s428 = sand.u32 %s99, 1
          %s429 = smul.addr %s428, 8
          %s430 = scalar_lea.vmem [#allocation9], %s429
          %431 = dma.done %s427, 128
        $region52: #{tpu_custom_call.1} parent=47 // pred_fallthru
          _
      $region48: #{tpu_custom_call.1} parent=5 // pred_fallthru
        _
    $region6: #{tpu_custom_call.1} parent=1 // loop_footer
      %s21 = sadd.s32 1, %s17
    $region7: #{tpu_custom_call.1} parent=1 // loop_footer_branch
      %16 = sbr.rel target = $region3
    $region8: #{tpu_custom_call.1} parent=1 // loop_exit
      _
    %432 = vsyncpa [#allocation5], 1
    %s433 = scalar_lea.sflag [#allocation5], 1
    %434 = vsyncpa %s433, 1
    %435 = vsyncpa [#allocation8], 1
    %s436 = scalar_lea.sflag [#allocation8], 1
    %437 = vsyncpa %s436, 1
    %438 = vsyncpa [#allocation6], 1
    %s439 = scalar_lea.sflag [#allocation6], 1
    %440 = vsyncpa %s439, 1

</llo_original>
